<compile_context>
chip_gen: v5e
topology: v5e:2x2
jax: 0.10.0
libtpu: 0.0.40
codegen_flags: <defaults>
</compile_context>

<pallas_src>
import math
import functools

import jax
import jax.numpy as jnp
from jax import lax
from jax.experimental import pallas as pl
from jax.experimental.pallas import tpu as pltpu

NEG_MASK = -1e30  # finite mask value: avoids NaN from (-inf) - (-inf)


def _tile(dim, preferred):
    """Largest tile <= `preferred` that evenly divides `dim`.

    Never silently falls back to the full dimension for large non-divisible
    dims (which would blow VMEM in the flash kernel)."""
    if dim <= preferred:
        return dim
    if dim % preferred == 0:
        return preferred
    for t in range(preferred, 0, -1):
        if dim % t == 0:
            return t
    return dim


# ----------------------------------------------------------------------------
# Tiled matmul + bias:  y = x @ W + b
# ----------------------------------------------------------------------------
def _linear_kernel(x_ref, w_ref, b_ref, o_ref, acc_ref):
    kk = pl.program_id(2)

    @pl.when(kk == 0)
    def _():
        acc_ref[...] = jnp.zeros_like(acc_ref)

    acc_ref[...] += jnp.dot(x_ref[...], w_ref[...],
                            preferred_element_type=jnp.float32)

    @pl.when(kk == pl.num_programs(2) - 1)
    def _():
        o_ref[...] = (acc_ref[...] + b_ref[...]).astype(o_ref.dtype)


def linear(x, w, b, *, out_dtype, tm=512, tn=512, tk=1024):
    """x: (M, K), w: (K, N), b: (N,) -> (M, N)."""
    M, K = x.shape
    Kw, N = w.shape
    assert K == Kw and b.shape == (N,)
    tm, tn, tk = _tile(M, tm), _tile(N, tn), _tile(K, tk)
    b2 = b.reshape(1, N).astype(jnp.float32)

    return pl.pallas_call(
        _linear_kernel,
        out_shape=jax.ShapeDtypeStruct((M, N), out_dtype),
        grid_spec=pltpu.PrefetchScalarGridSpec(
            num_scalar_prefetch=0,
            grid=(M // tm, N // tn, K // tk),
            in_specs=[
                pl.BlockSpec((tm, tk), lambda i, j, k: (i, k)),   # x tile
                pl.BlockSpec((tk, tn), lambda i, j, k: (k, j)),   # W tile
                pl.BlockSpec((1, tn), lambda i, j, k: (0, j)),    # bias tile
            ],
            out_specs=pl.BlockSpec((tm, tn), lambda i, j, k: (i, j)),
            scratch_shapes=[pltpu.VMEM((tm, tn), jnp.float32)],
        ),
        compiler_params=pltpu.CompilerParams(
            dimension_semantics=("parallel", "parallel", "arbitrary"),
            vmem_limit_bytes=32 * 1024 * 1024,
        ),
    )(x, w, b2)


# ----------------------------------------------------------------------------
# Flash-style causal attention over (B*H, T, D) tensors
# ----------------------------------------------------------------------------
def _flash_kernel(q_ref, k_ref, v_ref, o_ref, qs_sc, m_sc, l_sc, acc_sc,
                  *, tq, tkv, scale):
    qi = pl.program_id(1)
    ki = pl.program_id(2)
    q_start = qi * tq
    kv_start = ki * tkv

    @pl.when(ki == 0)
    def _():
        # Scale q once per query tile (hoisted out of the kv loop).
        qs_sc[...] = q_ref[0] * scale
        m_sc[...] = jnp.full_like(m_sc, -jnp.inf)
        l_sc[...] = jnp.zeros_like(l_sc)
        acc_sc[...] = jnp.zeros_like(acc_sc)

    def step(masked):
        q = qs_sc[...]
        k = k_ref[0]
        v = v_ref[0]

        # s = q @ k.T  (MXU, bf16 operands, f32 accumulation)
        s = lax.dot_general(q, k, (((1,), (1,)), ((), ())),
                            preferred_element_type=jnp.float32)   # (tq, tkv)
        if masked:
            row = q_start + lax.broadcasted_iota(jnp.int32, (tq, tkv), 0)
            col = kv_start + lax.broadcasted_iota(jnp.int32, (tq, tkv), 1)
            # exp(NEG_MASK - m) underflows to exactly 0, so no second `where`.
            s = jnp.where(col <= row, s, NEG_MASK)

        m_prev = m_sc[...]
        m_new = jnp.maximum(m_prev, jnp.max(s, axis=-1, keepdims=True))
        alpha = jnp.exp(m_prev - m_new)
        p = jnp.exp(s - m_new)

        l_sc[...] = alpha * l_sc[...] + jnp.sum(p, axis=-1, keepdims=True)
        acc_sc[...] = alpha * acc_sc[...] + jnp.dot(
            p.astype(v.dtype), v, preferred_element_type=jnp.float32)
        m_sc[...] = m_new

    # Fast path: KV tile lies entirely at/below the diagonal (no masking work).
    @pl.when(kv_start + (tkv - 1) <= q_start)
    def _():
        step(masked=False)

    # Masked path: only the tile(s) straddling the causal diagonal.
    @pl.when((kv_start + (tkv - 1) > q_start) & (kv_start < q_start + tq))
    def _():
        step(masked=True)

    # Fully-future tiles: neither branch runs (and, thanks to the clamped
    # index map, their K/V blocks were never DMA'd either).

    @pl.when(ki == pl.num_programs(2) - 1)
    def _():
        inv_l = pl.reciprocal(l_sc[...], approx=True)    # EUP slot, nearly free
        o_ref[0] = (acc_sc[...] * inv_l).astype(o_ref.dtype)


def flash_attention(q, k, v, *, scale, tq=256, tkv=512):
    """q, k, v: (B*H, T, D) -> (B*H, T, D), causal."""
    BH, T, D = q.shape
    tq = _tile(T, tq)
    tkv = _tile(T, tkv)

    # Clamp the KV block index to the last causally-relevant tile for this
    # query tile: fully-future tiles then map to an already-resident block, so
    # Pallas issues no DMA for them (compute is skipped in-kernel via pl.when).
    def kv_block(i, j):
        return jnp.minimum(j, ((i + 1) * tq - 1) // tkv)

    kernel = functools.partial(_flash_kernel, tq=tq, tkv=tkv, scale=scale)
    return pl.pallas_call(
        kernel,
        out_shape=jax.ShapeDtypeStruct((BH, T, D), q.dtype),
        grid_spec=pltpu.PrefetchScalarGridSpec(
            num_scalar_prefetch=0,
            grid=(BH, T // tq, T // tkv),
            in_specs=[
                pl.BlockSpec((1, tq, D), lambda b, i, j: (b, i, 0)),            # q
                pl.BlockSpec((1, tkv, D), lambda b, i, j: (b, kv_block(i, j), 0)),  # k
                pl.BlockSpec((1, tkv, D), lambda b, i, j: (b, kv_block(i, j), 0)),  # v
            ],
            out_specs=pl.BlockSpec((1, tq, D), lambda b, i, j: (b, i, 0)),
            scratch_shapes=[
                pltpu.VMEM((tq, D), q.dtype),      # scaled q (persists over kv)
                pltpu.VMEM((tq, 1), jnp.float32),  # running max m
                pltpu.VMEM((tq, 1), jnp.float32),  # running sum l
                pltpu.VMEM((tq, D), jnp.float32),  # output accumulator
            ],
        ),
        compiler_params=pltpu.CompilerParams(
            dimension_semantics=("parallel", "parallel", "arbitrary"),
            vmem_limit_bytes=32 * 1024 * 1024,
        ),
    )(q, k, v)


# ----------------------------------------------------------------------------
# Full module forward
# ----------------------------------------------------------------------------
def attention_forward(x, w_qkv, b_qkv, w_proj, b_proj, *, n_head,
                      compute_dtype=jnp.bfloat16):
    """x: (B, T, E); w_qkv: (E, 3E); b_qkv: (3E,); w_proj: (E, E); b_proj: (E,)."""
    B, T, E = x.shape
    assert E % n_head == 0, "nn_embed must be divisible by nn_head"
    D = E // n_head
    scale = 1.0 / math.sqrt(D)

    x2 = x.reshape(B * T, E).astype(compute_dtype)
    wq = w_qkv.astype(compute_dtype)
    wp = w_proj.astype(compute_dtype)

    # Fused QKV projection (tiled matmul kernel).
    qkv = linear(x2, wq, b_qkv, out_dtype=compute_dtype)          # (B*T, 3E)

    # Head split in the wrapper (see TODO(synk) at top about absorbing this
    # into BlockSpec index maps when D is a multiple of 128).
    qkv = qkv.reshape(B, T, 3, n_head, D)
    qkv = jnp.transpose(qkv, (2, 0, 3, 1, 4))                      # (3, B, H, T, D)
    q = qkv[0].reshape(B * n_head, T, D)
    k = qkv[1].reshape(B * n_head, T, D)
    v = qkv[2].reshape(B * n_head, T, D)

    y = flash_attention(q, k, v, scale=scale)                      # (B*H, T, D)
    y = y.reshape(B, n_head, T, D)
    y = jnp.transpose(y, (0, 2, 1, 3)).reshape(B * T, E)           # merge heads

    out = linear(y, wp, b_proj, out_dtype=x.dtype)                 # (B*T, E)
    return out.reshape(B, T, E)


def attention_reference(x, w_qkv, b_qkv, w_proj, b_proj, *, n_head):
    """Pure f32 JAX reference matching the PyTorch module."""
    B, T, E = x.shape
    D = E // n_head
    qkv = x @ w_qkv + b_qkv
    q, k, v = jnp.split(qkv, 3, axis=-1)
    q = q.reshape(B, T, n_head, D).transpose(0, 2, 1, 3)
    k = k.reshape(B, T, n_head, D).transpose(0, 2, 1, 3)
    v = v.reshape(B, T, n_head, D).transpose(0, 2, 1, 3)
    att = (q @ k.transpose(0, 1, 3, 2)) / math.sqrt(D)
    mask = jnp.tril(jnp.ones((T, T), dtype=bool))
    att = jnp.where(mask[None, None], att, -jnp.inf)
    att = jax.nn.softmax(att, axis=-1)
    y = (att @ v).transpose(0, 2, 1, 3).reshape(B, T, E)
    return y @ w_proj + b_proj


if __name__ == "__main__":
    # Config: nn_embed=32, nn_head=4, nn_max_tok_seq >= T; B=2, T=8.
    B, T, E, H = 2, 8, 32, 4
    key = jax.random.PRNGKey(0)
    kx, k1, k2, k3, k4 = jax.random.split(key, 5)

    x = jax.random.normal(kx, (B, T, E), dtype=jnp.float32)
    # Deterministic parameter init (already transposed to (in, out) layout).
    w_qkv = jax.random.normal(k1, (E, 3 * E), dtype=jnp.float32) * 0.02
    b_qkv = jax.random.normal(k2, (3 * E,), dtype=jnp.float32) * 0.02
    w_proj = jax.random.normal(k3, (E, E), dtype=jnp.float32) * 0.02
    b_proj = jax.random.normal(k4, (E,), dtype=jnp.float32) * 0.02

    out = attention_forward(x, w_qkv, b_qkv, w_proj, b_proj, n_head=H)
    out = jax.block_until_ready(out)

    ref = attention_reference(x, w_qkv, b_qkv, w_proj, b_proj, n_head=H)
    assert out.shape == (B, T, E)
    # bf16 MXU operands vs f32 reference: check max-norm relative error.
    rel_err = float(jnp.max(jnp.abs(out - ref)) / (jnp.max(jnp.abs(ref)) + 1e-8))
    assert rel_err < 3e-2, f"relative error too large: {rel_err}"
    print("KERNEL_OK")
</pallas_src>

<mosaic_0001>
module attributes {stable_mosaic.version = 11 : i64} {
  func.func @_linear_kernel(%arg0: i32, %arg1: i32, %arg2: i32, %arg3: memref<16x32xbf16, #tpu.memory_space<vmem>>, %arg4: memref<32x96xbf16, #tpu.memory_space<vmem>>, %arg5: memref<1x96xf32, #tpu.memory_space<vmem>>, %arg6: memref<16x96xbf16, #tpu.memory_space<vmem>>, %arg7: memref<16x96xf32, #tpu.memory_space<vmem>>) attributes {dimension_semantics = [#tpu.dimension_semantics<parallel>, #tpu.dimension_semantics<parallel>, #tpu.dimension_semantics<arbitrary>], iteration_bounds = array<i64: 1, 1, 1>, scalar_prefetch = 0 : i64, scratch_operands = 1 : i64, tpu.core_type = #tpu.core_type<tc>, window_params = [{transform_indices = @transform_0, window_bounds = array<i64: 16, 32>}, {transform_indices = @transform_1, window_bounds = array<i64: 32, 96>}, {transform_indices = @transform_2, window_bounds = array<i64: 1, 96>}, {transform_indices = @transform_3, window_bounds = array<i64: 16, 96>}]} {
    %c0_i32 = arith.constant 0 : i32
    %0 = arith.cmpi eq, %arg2, %c0_i32 : i32
    %1 = arith.extui %0 : i1 to i32
    %c0_i32_0 = arith.constant 0 : i32
    %2 = arith.cmpi ne, %1, %c0_i32_0 : i32
    scf.if %2 {
      %cst_10 = arith.constant 0.000000e+00 : f32
      %12 = vector.broadcast %cst_10 : f32 to vector<16x96xf32>
      %c0_11 = arith.constant 0 : index
      %c0_12 = arith.constant 0 : index
      %13 = vector.load %arg7[%c0_11, %c0_12] : memref<16x96xf32, #tpu.memory_space<vmem>>, vector<16x96xf32>
      tpu.vector_store %arg7[%c0_11, %c0_12], %12 {strides = array<i32>} : memref<16x96xf32, #tpu.memory_space<vmem>>, vector<16x96xf32>,
    } else {
    }
    %c0 = arith.constant 0 : index
    %c0_1 = arith.constant 0 : index
    %3 = vector.load %arg7[%c0, %c0_1] : memref<16x96xf32, #tpu.memory_space<vmem>>, vector<16x96xf32>
    %c0_2 = arith.constant 0 : index
    %c0_3 = arith.constant 0 : index
    %4 = vector.load %arg3[%c0_2, %c0_3] : memref<16x32xbf16, #tpu.memory_space<vmem>>, vector<16x32xbf16>
    %c0_4 = arith.constant 0 : index
    %c0_5 = arith.constant 0 : index
    %5 = vector.load %arg4[%c0_4, %c0_5] : memref<32x96xbf16, #tpu.memory_space<vmem>>, vector<32x96xbf16>
    %cst = arith.constant dense<0.000000e+00> : vector<16x96xf32>
    %6 = tpu.matmul %4, %5, %cst {dimension_numbers = #tpu.dot_dimension_numbers<[1], [0], [0], [1], [0, 0, 1, 1], [], []>} : vector<16x32xbf16>, vector<32x96xbf16>, vector<16x96xf32> -> vector<16x96xf32>
    %7 = arith.addf %3, %6 : vector<16x96xf32>
    %c0_6 = arith.constant 0 : index
    %c0_7 = arith.constant 0 : index
    %8 = vector.load %arg7[%c0_6, %c0_7] : memref<16x96xf32, #tpu.memory_space<vmem>>, vector<16x96xf32>
    tpu.vector_store %arg7[%c0_6, %c0_7], %7 {strides = array<i32>} : memref<16x96xf32, #tpu.memory_space<vmem>>, vector<16x96xf32>,
    %c0_i32_8 = arith.constant 0 : i32
    %9 = arith.cmpi eq, %arg2, %c0_i32_8 : i32
    %10 = arith.extui %9 : i1 to i32
    %c0_i32_9 = arith.constant 0 : i32
    %11 = arith.cmpi ne, %10, %c0_i32_9 : i32
    scf.if %11 {
      %c0_10 = arith.constant 0 : index
      %c0_11 = arith.constant 0 : index
      %12 = vector.load %arg7[%c0_10, %c0_11] : memref<16x96xf32, #tpu.memory_space<vmem>>, vector<16x96xf32>
      %c0_12 = arith.constant 0 : index
      %c0_13 = arith.constant 0 : index
      %13 = vector.load %arg5[%c0_12, %c0_13] : memref<1x96xf32, #tpu.memory_space<vmem>>, vector<1x96xf32>
      %14 = vector.broadcast %13 : vector<1x96xf32> to vector<16x96xf32>
      %15 = arith.addf %12, %14 : vector<16x96xf32>
      %16 = arith.truncf %15 : vector<16x96xf32> to vector<16x96xbf16>
      %c0_14 = arith.constant 0 : index
      %c0_15 = arith.constant 0 : index
      %17 = vector.load %arg6[%c0_14, %c0_15] : memref<16x96xbf16, #tpu.memory_space<vmem>>, vector<16x96xbf16>
      tpu.vector_store %arg6[%c0_14, %c0_15], %16 {strides = array<i32>} : memref<16x96xbf16, #tpu.memory_space<vmem>>, vector<16x96xbf16>,
    } else {
    }
    return
  }
  func.func @transform_0(%arg0: i32, %arg1: i32, %arg2: i32) -> (i32, i32) {
    %c0_i32 = arith.constant 0 : i32
    return %arg0, %arg2 : i32, i32
  }
  func.func @transform_1(%arg0: i32, %arg1: i32, %arg2: i32) -> (i32, i32) {
    %c0_i32 = arith.constant 0 : i32
    return %arg2, %arg1 : i32, i32
  }
  func.func @transform_2(%arg0: i32, %arg1: i32, %arg2: i32) -> (i32, i32) {
    %c0_i32 = arith.constant 0 : i32
    %c0_i32_0 = arith.constant 0 : i32
    return %c0_i32, %arg1 : i32, i32
  }
  func.func @transform_3(%arg0: i32, %arg1: i32, %arg2: i32) -> (i32, i32) {
    %c0_i32 = arith.constant 0 : i32
    return %arg0, %arg1 : i32, i32
  }
}

</mosaic_0001>

<llo_original>
// kernel: tpu_custom_call.1
$region0: #{tpu_custom_call.1}
  #allocation0 [shape = 'u32[]', space=smem, size = 0x4, offset = 0x4, fixed_abs, tag = 'smem constant byte address 0x4 - core index']
  #allocation1 [shape = 'u32[72,128]{1,0:T(1,128)}', space=vmem, size = 0x9000, scoped, tag = 'internal scratch']
  #allocation2 [shape = 'f32[16,96]{1,0:T(8,128)}', space=vmem, size = 0x2000, scoped, tag = 'scratch operand']
  %s0 = inlined_call_operand.hbm [shape: bf16[16,32], index: 0, kind: input, shape index: {}]
  %s1 = inlined_call_operand.hbm [shape: bf16[32,96], index: 1, kind: input, shape index: {}]
  %s2 = inlined_call_operand.vmem [shape: f32[1,96], index: 2, kind: input, shape index: {}]
  %s3 = inlined_call_operand.hbm [shape: bf16[16,96], index: 3, kind: output, shape index: {}]
  %s4 = sld [smem:[#allocation0]]
  $region38: #{tpu_custom_call.1} parent=0
    _
  %s6 = ssub.s32 1, %s4
  %s7 = scalar_select 0, %s6, %s4
  $region1: #{tpu_custom_call.1} parent=0
    #allocation3 [shape = 'u8[4096]{0}', space=vmem, size = 0x1000, scoped, tag = 'input window, operand 0, single buffered']
    #allocation4 [shape = 's32[1]{0}', space=sflag, size = 0x4, scoped, tag = 'scoped memory for tpu_custom_call.1']
    #allocation5 [shape = 's32[1]{0}', space=sflag, size = 0x4, scoped, tag = 'scoped memory for tpu_custom_call.1']
    #allocation6 [shape = 'u8[8192]{0}', space=vmem, size = 0x2000, scoped, tag = 'input window, operand 1, single buffered']
    #allocation7 [shape = 's32[1]{0}', space=sflag, size = 0x4, scoped, tag = 'scoped memory for tpu_custom_call.1']
    #allocation8 [shape = 'u8[4096]{0}', space=vmem, size = 0x1000, scoped, tag = 'output window, operand 0, single buffered']
    %8 = vsyncpa [#allocation4], 0
    %9 = vsyncpa [#allocation7], 0
    %10 = vsyncpa [#allocation5], 0
    // Predicated region
    $region2: #{tpu_custom_call.1} parent=1 // pred_check
      _
    $region3: #{tpu_custom_call.1} parent=1 // pred_check_branch
      %12 = sbr.rel (0) target = $region5
    $region4: #{tpu_custom_call.1} parent=1 // pred_region
      %14 = vsyncadd [#allocation4], 0
      %s15 = sshll.u32 %s0, 4
      %s16 = int_to_ptr.hbm [resolvable:$true] %s15
      %s17 = sshll.u32 [#allocation3], 4
      %s18 = int_to_ptr.vmem [resolvable:$true] %s17
      %23 = dma.hbm_to_vmem [thread:$0]  %s16, 128, %s18, [#allocation4], 64, 64, 4
    $region5: #{tpu_custom_call.1} parent=1 // pred_fallthru
      _
    // Predicated region
    $region6: #{tpu_custom_call.1} parent=1 // pred_check
      _
    $region7: #{tpu_custom_call.1} parent=1 // pred_check_branch
      %25 = sbr.rel (0) target = $region9
    $region8: #{tpu_custom_call.1} parent=1 // pred_region
      %27 = vsyncadd [#allocation7], 0
      %s28 = sshll.u32 %s1, 4
      %s29 = int_to_ptr.hbm [resolvable:$true] %s28
      %s30 = sshll.u32 [#allocation6], 4
      %s31 = int_to_ptr.vmem [resolvable:$true] %s30
      %36 = dma.hbm_to_vmem [thread:$0]  %s29, 256, %s31, [#allocation7], 64, 64, 4
    $region9: #{tpu_custom_call.1} parent=1 // pred_fallthru
      _
    // Predicated region
    $region10: #{tpu_custom_call.1} parent=1 // pred_check
      _
    $region11: #{tpu_custom_call.1} parent=1 // pred_check_branch
      %38 = sbr.rel (0) target = $region13
    $region12: #{tpu_custom_call.1} parent=1 // pred_region
      _
    $region13: #{tpu_custom_call.1} parent=1 // pred_fallthru
      _
    // Predicated region
    $region14: #{tpu_custom_call.1} parent=1 // pred_check
      _
    $region15: #{tpu_custom_call.1} parent=1 // pred_check_branch
      %40 = sbr.rel (0) target = $region17
    $region16: #{tpu_custom_call.1} parent=1 // pred_region
      %42 = dma.done [#allocation4], 128
    $region17: #{tpu_custom_call.1} parent=1 // pred_fallthru
      _
    // Predicated region
    $region18: #{tpu_custom_call.1} parent=1 // pred_check
      _
    $region19: #{tpu_custom_call.1} parent=1 // pred_check_branch
      %44 = sbr.rel (0) target = $region21
    $region20: #{tpu_custom_call.1} parent=1 // pred_region
      %46 = dma.done [#allocation7], 256
    $region21: #{tpu_custom_call.1} parent=1 // pred_fallthru
      _
    %p48 = scmp.eq.s32.totalorder 0, 0
    // Predicated region
    $region22: #{tpu_custom_call.1} parent=1 // pred_check
      %p49 = pneg %p48
    $region23: #{tpu_custom_call.1} parent=1 // pred_check_branch
      %51 = sbr.rel (%p49) target = $region25
    $region24: #{tpu_custom_call.1} parent=1 // pred_region
      %vm52 = vcmask 785408
      %53 = vst.msk [vmem:[#allocation2] sm:$0xff] %vm52, 0.0
      %54 = vst.msk [vmem:[#allocation2 + $0x8] sm:$0xff] %vm52, 0.0
    $region25: #{tpu_custom_call.1} parent=1 // pred_fallthru
      _
    %v55 = vld [vmem:[#allocation2] sm:$0xff]
    %v56 = vld [vmem:[#allocation2 + $0x8] sm:$0xff]
    %v57 = vld [vmem:[#allocation3] sm:$0xf]
    %v58 = vld [vmem:[#allocation3 + $0x4] sm:$0xf]
    %v59 = vld [vmem:[#allocation6] sm:$0xf]
    %v60 = vld [vmem:[#allocation6 + $0x4] sm:$0xf]
    %v61 = vld [vmem:[#allocation6 + $0x8] sm:$0xf]
    %v62 = vld [vmem:[#allocation6 + $0xc] sm:$0xf]
    %v65 = vunpack.c.l.b16 %v57
    %v66 = vunpack.c.l.b16 %v58
    %v67 = vpack.c.b16 %v66, %v65
    %v72 = vunpack.c.l.b16 %v59
    %v73 = vunpack.c.l.b16 %v60
    %v74 = vunpack.c.l.b16 %v61
    %v75 = vunpack.c.l.b16 %v62
    %v76 = vpack.c.b16 %v73, %v72
    %v77 = vpack.c.b16 %v75, %v74
    %vm80 = vcmask 261120
    %v82 = vsel %vm80, %v67, 0
    %84 = vmatpush.bf16.msra.mxu0 0
    %85 = vmatpush.bf16.msra.mxu0 0
    %86 = vmatpush.bf16.msra.mxu0 0
    %87 = vmatpush.bf16.msra.mxu0 0
    %88 = vmatpush.bf16.msra.mxu0 0
    %89 = vmatpush.bf16.msra.mxu0 0
    %90 = vmatpush.bf16.msra.mxu0 %v77
    %91 = vmatpush.bf16.msra.mxu0 %v76
    %92 = vmatmul.bf16.gmra.mxu0 %v82
    %v93 = vpop.f32.mrf.mxu0
    %v94 = vadd.f32 0.0, %v93
    %v95 = vpop.f32.mrf.mxu0
    %v96 = vadd.f32 0.0, %v95
    %97 = vdwg.mxu0
    %v98 = vadd.f32 %v55, %v94
    %v99 = vadd.f32 %v56, %v96
    %vm100 = vcmask 785408
    %101 = vst.msk [vmem:[#allocation2] sm:$0xff] %vm100, %v98
    %102 = vst.msk [vmem:[#allocation2 + $0x8] sm:$0xff] %vm100, %v99
    // Predicated region
    $region26: #{tpu_custom_call.1} parent=1 // pred_check
      %p103 = pneg %p48
    $region27: #{tpu_custom_call.1} parent=1 // pred_check_branch
      %105 = sbr.rel (%p103) target = $region29
    $region28: #{tpu_custom_call.1} parent=1 // pred_region
      %v106 = vld [vmem:[#allocation2] sm:$0xff]
      %v107 = vld [vmem:[#allocation2 + $0x8] sm:$0xff]
      %v108 = vld [vmem:[%s2] sm:$0x1]
      %v110 = vperm.slane %v108, 0
      %v112 = vadd.f32 %v106, %v110
      %v113 = vadd.f32 %v107, %v110
      %v114 = vpack.c.bf16 %v112, %v112
      %v115 = vpack.c.bf16 %v113, %v113
      %vm116 = vcmask 781312
      %117 = vst.msk [vmem:[#allocation8] sm:$0xf] %vm116, %v114
      %118 = vst.msk [vmem:[#allocation8 + $0x4] sm:$0xf] %vm116, %v115
    $region29: #{tpu_custom_call.1} parent=1 // pred_fallthru
      _
    // Predicated region
    $region30: #{tpu_custom_call.1} parent=1 // pred_check
      _
    $region31: #{tpu_custom_call.1} parent=1 // pred_check_branch
      %120 = sbr.rel (0) target = $region33
    $region32: #{tpu_custom_call.1} parent=1 // pred_region
      %122 = vsyncadd [#allocation5], 0
      %s123 = sshll.u32 [#allocation8], 4
      %s124 = int_to_ptr.vmem [resolvable:$true] %s123
      %s125 = sshll.u32 %s3, 4
      %s126 = int_to_ptr.hbm [resolvable:$true] %s125
      %131 = dma.vmem_to_hbm [thread:$0]  %s124, 128, %s126, [#allocation5], 64, 64, 4
    $region33: #{tpu_custom_call.1} parent=1 // pred_fallthru
      _
    // Predicated region
    $region34: #{tpu_custom_call.1} parent=1 // pred_check
      _
    $region35: #{tpu_custom_call.1} parent=1 // pred_check_branch
      %133 = sbr.rel (0) target = $region37
    $region36: #{tpu_custom_call.1} parent=1 // pred_region
      %135 = dma.done [#allocation5], 128
    $region37: #{tpu_custom_call.1} parent=1 // pred_fallthru
      _
    %136 = vsyncpa [#allocation4], 1
    %137 = vsyncpa [#allocation7], 1
    %138 = vsyncpa [#allocation5], 1

</llo_original>
